<compile_context>
chip_gen: v5e
topology: v5e:2x2
jax: 0.10.0
libtpu: 0.0.40
codegen_flags: <defaults>
</compile_context>

<pallas_src>
import jax
import jax.numpy as jnp
from jax import lax
from jax.experimental import pallas as pl
from jax.experimental.pallas import tpu as pltpu


def _band_weights(w_hwio, width):
    """3x3 HWIO conv weight -> banded matrix, flattened over kernel rows.

    band[dy*W*Cin + w_in*Cin + c, w_out*Cout + o] = w[dy, dx, c, o] with
    dx = w_in - w_out + 1 (stride-1, pad-1 conv). Taps falling outside the
    image are absent (zero), so the column halo is folded into the weights and
    each conv layer becomes a single (Nb*H, 3*W*Cin) x (3*W*Cin, W*Cout) matmul
    against the row-im2col slab built inside the kernel.
    """
    kh, kw, cin, cout = w_hwio.shape
    win = jnp.arange(width)[:, None]
    wout = jnp.arange(width)[None, :]
    place = (win[None, :, :] == wout[None, :, :]
             + jnp.arange(kw)[:, None, None] - 1).astype(w_hwio.dtype)
    band = jnp.einsum('hxco,xiw->hicwo', w_hwio, place)   # (kh, W, cin, W, cout)
    return band.reshape(kh * width * cin, width * cout)


def _make_double_conv_kernel(Nb, H, W, Cin, Cm, Cout, out_dtype):
    WCi, WCm, WCo = W * Cin, W * Cm, W * Cout

    def kernel(x_ref, w1_ref, b1_ref, w2_ref, b2_ref, o_ref, xcol_ref, mcol_ref):
        # x_ref   : (Nb, H, W*Cin)        bf16 input block (lanes = W*Cin)
        # w1_ref  : (3*W*Cin, W*Cm)       bf16 banded conv1 weights (BN scale folded)
        # b1_ref  : (1, W*Cm)             f32 conv1 BN shift tiled onto lanes
        # w2_ref  : (3*W*Cm, W*Cout)      bf16 banded conv2 weights
        # b2_ref  : (1, W*Cout)           f32 conv2 BN shift tiled onto lanes
        # o_ref   : (Nb, H, W*Cout)       lane-dense output block
        # xcol_ref: (Nb, H, 3*W*Cin) VMEM bf16 row-im2col of the input
        # mcol_ref: (Nb, H, 3*W*Cm)  VMEM bf16 row-im2col of the intermediate
        x = x_ref[...]

        # ---- layer 1: build row-im2col; zero ONLY the two halo sub-blocks ----
        xcol_ref[:, 0:1, 0:WCi] = jnp.zeros((Nb, 1, WCi), x.dtype)
        xcol_ref[:, 1:H, 0:WCi] = x[:, 0:H - 1, :]             # row h-1
        xcol_ref[:, :, WCi:2 * WCi] = x                        # row h
        xcol_ref[:, 0:H - 1, 2 * WCi:3 * WCi] = x[:, 1:H, :]   # row h+1
        xcol_ref[:, H - 1:H, 2 * WCi:3 * WCi] = jnp.zeros((Nb, 1, WCi), x.dtype)

        a1 = jnp.dot(xcol_ref[...].reshape(Nb * H, 3 * WCi), w1_ref[...],
                     preferred_element_type=jnp.float32)       # M=Nb*H, K=3*W*Cin
        h1 = jnp.maximum(a1 + b1_ref[...], 0.0)                # f32 BN shift + ReLU
        h1 = h1.astype(jnp.bfloat16).reshape(Nb, H, WCm)

        # ---- layer 2: intermediate stays in VMEM, same im2col trick ----
        mcol_ref[:, 0:1, 0:WCm] = jnp.zeros((Nb, 1, WCm), jnp.bfloat16)
        mcol_ref[:, 1:H, 0:WCm] = h1[:, 0:H - 1, :]
        mcol_ref[:, :, WCm:2 * WCm] = h1
        mcol_ref[:, 0:H - 1, 2 * WCm:3 * WCm] = h1[:, 1:H, :]
        mcol_ref[:, H - 1:H, 2 * WCm:3 * WCm] = jnp.zeros((Nb, 1, WCm), jnp.bfloat16)

        a2 = jnp.dot(mcol_ref[...].reshape(Nb * H, 3 * WCm), w2_ref[...],
                     preferred_element_type=jnp.float32)       # M=Nb*H, K=3*W*Cm
        o = jnp.maximum(a2 + b2_ref[...], 0.0)
        o_ref[...] = o.reshape(Nb, H, WCo).astype(out_dtype)

    return kernel


def _pick_batch_block(N, H, target_m=256):
    """Fold batch into matmul M; keep >= 2 grid steps when N allows (v7x TCs)."""
    nb_cap = max(1, N // 2)
    nb_want = max(1, min(nb_cap, -(-target_m // H)))
    nb = 1
    for d in range(1, nb_want + 1):
        if N % d == 0:
            nb = d
    return nb


def double_conv(x_nchw, params):
    """DoubleConv forward (eval-mode BN). Input/output in PyTorch NCHW layout."""
    N, Cin, H, W = x_nchw.shape
    w1, w2 = params['w1'], params['w2']
    Cm, Cout = w1.shape[-1], w2.shape[-1]
    Nb = _pick_batch_block(N, H)

    # Hard switch on the banded lowering: bf16 bands, double-buffered, must fit
    # comfortably in v7x's 64 MiB per-TC VMEM.
    band_bytes = 2 * 2 * 3 * W * (W * Cin * Cm + W * Cm * Cout)
    if W > 32 or band_bytes > (32 << 20):
        # TODO(synk): fall back to a W-tiled band or the per-tap K=C lowering.
        raise NotImplementedError(
            "banded-weight lowering would blow the VMEM budget for this shape")

    # Fold BN scale into conv weights (exact in eval mode); keep shift as bias.
    w1b = _band_weights(w1 * params['scale1'].astype(w1.dtype), W).astype(jnp.bfloat16)
    w2b = _band_weights(w2 * params['scale2'].astype(w2.dtype), W).astype(jnp.bfloat16)
    b1 = jnp.tile(params['shift1'].astype(jnp.float32), W).reshape(1, W * Cm)
    b2 = jnp.tile(params['shift2'].astype(jnp.float32), W).reshape(1, W * Cout)

    # NCHW -> NHWC -> (N, H, W*Cin): channels on the lane axis, W folded in.
    # The bf16 cast fuses into the transpose copy and halves HBM->VMEM traffic.
    x2 = jnp.transpose(x_nchw, (0, 2, 3, 1)).reshape(N, H, W * Cin).astype(jnp.bfloat16)

    # Derived VMEM budget: double-buffered in/out/weight blocks + scratch + headroom.
    out_itemsize = jnp.dtype(x_nchw.dtype).itemsize
    est = (2 * Nb * H * W * Cin * 2                 # input block (bf16, dbl-buf)
           + 2 * Nb * H * W * Cout * out_itemsize   # output block (dbl-buf)
           + band_bytes                             # bf16 weights (dbl-buf)
           + 2 * (W * Cm + W * Cout) * 4            # biases (f32, dbl-buf)
           + Nb * H * 3 * W * (Cin + Cm) * 2)       # im2col scratches (bf16)
    vmem_limit = int(min(max(2 * est, 4 << 20), 48 << 20))

    kernel = _make_double_conv_kernel(Nb, H, W, Cin, Cm, Cout, x_nchw.dtype)
    out2 = pl.pallas_call(
        kernel,
        out_shape=jax.ShapeDtypeStruct((N, H, W * Cout), x_nchw.dtype),
        grid=(N // Nb,),
        in_specs=[
            pl.BlockSpec((Nb, H, W * Cin), lambda n: (n, 0, 0)),
            pl.BlockSpec((3 * W * Cin, W * Cm), lambda n: (0, 0)),
            pl.BlockSpec((1, W * Cm), lambda n: (0, 0)),
            pl.BlockSpec((3 * W * Cm, W * Cout), lambda n: (0, 0)),
            pl.BlockSpec((1, W * Cout), lambda n: (0, 0)),
        ],
        out_specs=pl.BlockSpec((Nb, H, W * Cout), lambda n: (n, 0, 0)),
        scratch_shapes=[
            pltpu.VMEM((Nb, H, 3 * W * Cin), jnp.bfloat16),   # im2col, layer 1
            pltpu.VMEM((Nb, H, 3 * W * Cm), jnp.bfloat16),    # im2col, layer 2
        ],
        compiler_params=pltpu.CompilerParams(
            dimension_semantics=("parallel",),
            vmem_limit_bytes=vmem_limit),
    )(x2, w1b, b1, w2b, b2)

    # (N, H, W*Cout) -> (N, H, W, Cout) -> NCHW
    return jnp.transpose(out2.reshape(N, H, W, Cout), (0, 3, 1, 2))


def fold_bn(gamma, beta, running_mean, running_var, eps=1e-5):
    scale = gamma / jnp.sqrt(running_var + eps)
    shift = beta - running_mean * scale
    return scale, shift


def init_double_conv_params(key, in_channels, out_channels):
    k1, k2, k3, k4, k5, k6 = jax.random.split(key, 6)
    # Conv weights directly in HWIO layout (PyTorch's OIHW is a transpose away).
    w1 = jax.random.normal(k1, (3, 3, in_channels, out_channels), jnp.float32) * 0.2
    w2 = jax.random.normal(k2, (3, 3, out_channels, out_channels), jnp.float32) * 0.2
    # BatchNorm affine params + running stats (deterministic, non-trivial).
    g1 = 1.0 + 0.1 * jax.random.normal(k3, (out_channels,), jnp.float32)
    b1 = 0.1 * jax.random.normal(k4, (out_channels,), jnp.float32)
    g2 = 1.0 + 0.1 * jax.random.normal(k5, (out_channels,), jnp.float32)
    b2 = 0.1 * jax.random.normal(k6, (out_channels,), jnp.float32)
    m1 = jnp.zeros((out_channels,), jnp.float32)
    v1 = jnp.ones((out_channels,), jnp.float32)
    m2 = jnp.zeros((out_channels,), jnp.float32)
    v2 = jnp.ones((out_channels,), jnp.float32)
    s1, sh1 = fold_bn(g1, b1, m1, v1)
    s2, sh2 = fold_bn(g2, b2, m2, v2)
    return dict(w1=w1, scale1=s1, shift1=sh1, w2=w2, scale2=s2, shift2=sh2)


def _reference_double_conv(x_nchw, params):
    """Pure-JAX f32 reference (lax conv) for a correctness cross-check."""
    def one(x, w, s, sh):
        y = lax.conv_general_dilated(
            x, w, window_strides=(1, 1), padding=((1, 1), (1, 1)),
            dimension_numbers=('NHWC', 'HWIO', 'NHWC'))
        return jnp.maximum(y * s + sh, 0.0)
    x = jnp.transpose(x_nchw, (0, 2, 3, 1))
    x = one(x, params['w1'], params['scale1'], params['shift1'])
    x = one(x, params['w2'], params['scale2'], params['shift2'])
    return jnp.transpose(x, (0, 3, 1, 2))


if __name__ == "__main__":
    key = jax.random.PRNGKey(0)
    kx, kp = jax.random.split(key)

    N, Cin, Cout, H, W = 2, 4, 8, 16, 16
    x = jax.random.normal(kx, (N, Cin, H, W), jnp.float32)   # PyTorch NCHW input
    params = init_double_conv_params(kp, Cin, Cout)

    fwd = jax.jit(double_conv)
    out = jax.block_until_ready(fwd(x, params))

    ref = jax.block_until_ready(_reference_double_conv(x, params))
    assert out.shape == (N, Cout, H, W)
    # bf16 MXU operands -> loosened tolerance vs the f32 reference.
    assert jnp.allclose(out, ref, atol=5e-2, rtol=5e-2), \
        float(jnp.max(jnp.abs(out - ref)))

    print("KERNEL_OK")
</pallas_src>

<mosaic_0001>
module attributes {stable_mosaic.version = 11 : i64} {
  func.func @kernel(%arg0: i32, %arg1: memref<1x16x64xbf16, #tpu.memory_space<vmem>>, %arg2: memref<192x128xbf16, #tpu.memory_space<vmem>>, %arg3: memref<1x128xf32, #tpu.memory_space<vmem>>, %arg4: memref<384x128xbf16, #tpu.memory_space<vmem>>, %arg5: memref<1x128xf32, #tpu.memory_space<vmem>>, %arg6: memref<1x16x128xf32, #tpu.memory_space<vmem>>, %arg7: memref<1x16x192xbf16, #tpu.memory_space<vmem>>, %arg8: memref<1x16x384xbf16, #tpu.memory_space<vmem>>) attributes {dimension_semantics = [#tpu.dimension_semantics<parallel>], iteration_bounds = array<i64: 2>, scalar_prefetch = 0 : i64, scratch_operands = 2 : i64, tpu.core_type = #tpu.core_type<tc>, window_params = [{transform_indices = @transform_0, window_bounds = array<i64: 1, 16, 64>}, {pipeline_mode = #tpu.pipeline_mode<synchronous>, transform_indices = @transform_1, window_bounds = array<i64: 192, 128>}, {pipeline_mode = #tpu.pipeline_mode<synchronous>, transform_indices = @transform_2, window_bounds = array<i64: 1, 128>}, {pipeline_mode = #tpu.pipeline_mode<synchronous>, transform_indices = @transform_3, window_bounds = array<i64: 384, 128>}, {pipeline_mode = #tpu.pipeline_mode<synchronous>, transform_indices = @transform_4, window_bounds = array<i64: 1, 128>}, {transform_indices = @transform_5, window_bounds = array<i64: 1, 16, 128>}]} {
    %c0 = arith.constant 0 : index
    %c0_0 = arith.constant 0 : index
    %c0_1 = arith.constant 0 : index
    %0 = vector.load %arg1[%c0, %c0_0, %c0_1] : memref<1x16x64xbf16, #tpu.memory_space<vmem>>, vector<1x16x64xbf16>
    %cst = arith.constant 0.000000e+00 : bf16
    %1 = vector.broadcast %cst : bf16 to vector<1x1x64xbf16>
    %c0_2 = arith.constant 0 : index
    %c0_3 = arith.constant 0 : index
    %c0_4 = arith.constant 0 : index
    %2 = vector.load %arg7[%c0_2, %c0_3, %c0_4] : memref<1x16x192xbf16, #tpu.memory_space<vmem>>, vector<1x1x64xbf16>
    tpu.vector_store %arg7[%c0_2, %c0_3, %c0_4], %1 {strides = array<i32>} : memref<1x16x192xbf16, #tpu.memory_space<vmem>>, vector<1x1x64xbf16>,
    %3 = vector.extract_strided_slice %0 {offsets = [0, 0, 0], sizes = [1, 15, 64], strides = [1, 1, 1]} : vector<1x16x64xbf16> to vector<1x15x64xbf16>
    %c0_5 = arith.constant 0 : index
    %c1 = arith.constant 1 : index
    %c0_6 = arith.constant 0 : index
    %4 = vector.load %arg7[%c0_5, %c1, %c0_6] : memref<1x16x192xbf16, #tpu.memory_space<vmem>>, vector<1x15x64xbf16>
    tpu.vector_store %arg7[%c0_5, %c1, %c0_6], %3 {strides = array<i32>} : memref<1x16x192xbf16, #tpu.memory_space<vmem>>, vector<1x15x64xbf16>,
    %c0_7 = arith.constant 0 : index
    %c0_8 = arith.constant 0 : index
    %c64 = arith.constant 64 : index
    %5 = vector.load %arg7[%c0_7, %c0_8, %c64] : memref<1x16x192xbf16, #tpu.memory_space<vmem>>, vector<1x16x64xbf16>
    tpu.vector_store %arg7[%c0_7, %c0_8, %c64], %0 {strides = array<i32>} : memref<1x16x192xbf16, #tpu.memory_space<vmem>>, vector<1x16x64xbf16>,
    %6 = vector.extract_strided_slice %0 {offsets = [0, 1, 0], sizes = [1, 15, 64], strides = [1, 1, 1]} : vector<1x16x64xbf16> to vector<1x15x64xbf16>
    %c0_9 = arith.constant 0 : index
    %c0_10 = arith.constant 0 : index
    %c128 = arith.constant 128 : index
    %7 = vector.load %arg7[%c0_9, %c0_10, %c128] : memref<1x16x192xbf16, #tpu.memory_space<vmem>>, vector<1x15x64xbf16>
    tpu.vector_store %arg7[%c0_9, %c0_10, %c128], %6 {strides = array<i32>} : memref<1x16x192xbf16, #tpu.memory_space<vmem>>, vector<1x15x64xbf16>,
    %cst_11 = arith.constant 0.000000e+00 : bf16
    %8 = vector.broadcast %cst_11 : bf16 to vector<1x1x64xbf16>
    %c0_12 = arith.constant 0 : index
    %c15 = arith.constant 15 : index
    %c128_13 = arith.constant 128 : index
    %9 = vector.load %arg7[%c0_12, %c15, %c128_13] : memref<1x16x192xbf16, #tpu.memory_space<vmem>>, vector<1x1x64xbf16>
    tpu.vector_store %arg7[%c0_12, %c15, %c128_13], %8 {strides = array<i32>} : memref<1x16x192xbf16, #tpu.memory_space<vmem>>, vector<1x1x64xbf16>,
    %c0_14 = arith.constant 0 : index
    %c0_15 = arith.constant 0 : index
    %c0_16 = arith.constant 0 : index
    %10 = vector.load %arg7[%c0_14, %c0_15, %c0_16] : memref<1x16x192xbf16, #tpu.memory_space<vmem>>, vector<1x16x192xbf16>
    %11 = vector.shape_cast %10 : vector<1x16x192xbf16> to vector<16x192xbf16>
    %c0_17 = arith.constant 0 : index
    %c0_18 = arith.constant 0 : index
    %12 = vector.load %arg2[%c0_17, %c0_18] : memref<192x128xbf16, #tpu.memory_space<vmem>>, vector<192x128xbf16>
    %cst_19 = arith.constant dense<0.000000e+00> : vector<16x128xf32>
    %13 = tpu.matmul %11, %12, %cst_19 {dimension_numbers = #tpu.dot_dimension_numbers<[1], [0], [0], [1], [0, 0, 1, 1], [], []>} : vector<16x192xbf16>, vector<192x128xbf16>, vector<16x128xf32> -> vector<16x128xf32>
    %c0_20 = arith.constant 0 : index
    %c0_21 = arith.constant 0 : index
    %14 = vector.load %arg3[%c0_20, %c0_21] : memref<1x128xf32, #tpu.memory_space<vmem>>, vector<1x128xf32>
    %15 = vector.broadcast %14 : vector<1x128xf32> to vector<16x128xf32>
    %16 = arith.addf %13, %15 : vector<16x128xf32>
    %cst_22 = arith.constant 0.000000e+00 : f32
    %17 = vector.broadcast %cst_22 : f32 to vector<16x128xf32>
    %18 = arith.maximumf %16, %17 : vector<16x128xf32>
    %19 = arith.truncf %18 : vector<16x128xf32> to vector<16x128xbf16>
    %20 = vector.shape_cast %19 : vector<16x128xbf16> to vector<1x16x128xbf16>
    %cst_23 = arith.constant 0.000000e+00 : bf16
    %21 = vector.broadcast %cst_23 : bf16 to vector<1x1x128xbf16>
    %c0_24 = arith.constant 0 : index
    %c0_25 = arith.constant 0 : index
    %c0_26 = arith.constant 0 : index
    %22 = vector.load %arg8[%c0_24, %c0_25, %c0_26] : memref<1x16x384xbf16, #tpu.memory_space<vmem>>, vector<1x1x128xbf16>
    tpu.vector_store %arg8[%c0_24, %c0_25, %c0_26], %21 {strides = array<i32>} : memref<1x16x384xbf16, #tpu.memory_space<vmem>>, vector<1x1x128xbf16>,
    %23 = vector.extract_strided_slice %20 {offsets = [0, 0, 0], sizes = [1, 15, 128], strides = [1, 1, 1]} : vector<1x16x128xbf16> to vector<1x15x128xbf16>
    %c0_27 = arith.constant 0 : index
    %c1_28 = arith.constant 1 : index
    %c0_29 = arith.constant 0 : index
    %24 = vector.load %arg8[%c0_27, %c1_28, %c0_29] : memref<1x16x384xbf16, #tpu.memory_space<vmem>>, vector<1x15x128xbf16>
    tpu.vector_store %arg8[%c0_27, %c1_28, %c0_29], %23 {strides = array<i32>} : memref<1x16x384xbf16, #tpu.memory_space<vmem>>, vector<1x15x128xbf16>,
    %c0_30 = arith.constant 0 : index
    %c0_31 = arith.constant 0 : index
    %c128_32 = arith.constant 128 : index
    %25 = vector.load %arg8[%c0_30, %c0_31, %c128_32] : memref<1x16x384xbf16, #tpu.memory_space<vmem>>, vector<1x16x128xbf16>
    tpu.vector_store %arg8[%c0_30, %c0_31, %c128_32], %20 {strides = array<i32>} : memref<1x16x384xbf16, #tpu.memory_space<vmem>>, vector<1x16x128xbf16>,
    %26 = vector.extract_strided_slice %20 {offsets = [0, 1, 0], sizes = [1, 15, 128], strides = [1, 1, 1]} : vector<1x16x128xbf16> to vector<1x15x128xbf16>
    %c0_33 = arith.constant 0 : index
    %c0_34 = arith.constant 0 : index
    %c256 = arith.constant 256 : index
    %27 = vector.load %arg8[%c0_33, %c0_34, %c256] : memref<1x16x384xbf16, #tpu.memory_space<vmem>>, vector<1x15x128xbf16>
    tpu.vector_store %arg8[%c0_33, %c0_34, %c256], %26 {strides = array<i32>} : memref<1x16x384xbf16, #tpu.memory_space<vmem>>, vector<1x15x128xbf16>,
    %cst_35 = arith.constant 0.000000e+00 : bf16
    %28 = vector.broadcast %cst_35 : bf16 to vector<1x1x128xbf16>
    %c0_36 = arith.constant 0 : index
    %c15_37 = arith.constant 15 : index
    %c256_38 = arith.constant 256 : index
    %29 = vector.load %arg8[%c0_36, %c15_37, %c256_38] : memref<1x16x384xbf16, #tpu.memory_space<vmem>>, vector<1x1x128xbf16>
    tpu.vector_store %arg8[%c0_36, %c15_37, %c256_38], %28 {strides = array<i32>} : memref<1x16x384xbf16, #tpu.memory_space<vmem>>, vector<1x1x128xbf16>,
    %c0_39 = arith.constant 0 : index
    %c0_40 = arith.constant 0 : index
    %c0_41 = arith.constant 0 : index
    %30 = vector.load %arg8[%c0_39, %c0_40, %c0_41] : memref<1x16x384xbf16, #tpu.memory_space<vmem>>, vector<1x16x384xbf16>
    %31 = vector.shape_cast %30 : vector<1x16x384xbf16> to vector<16x384xbf16>
    %c0_42 = arith.constant 0 : index
    %c0_43 = arith.constant 0 : index
    %32 = vector.load %arg4[%c0_42, %c0_43] : memref<384x128xbf16, #tpu.memory_space<vmem>>, vector<384x128xbf16>
    %cst_44 = arith.constant dense<0.000000e+00> : vector<16x128xf32>
    %33 = tpu.matmul %31, %32, %cst_44 {dimension_numbers = #tpu.dot_dimension_numbers<[1], [0], [0], [1], [0, 0, 1, 1], [], []>} : vector<16x384xbf16>, vector<384x128xbf16>, vector<16x128xf32> -> vector<16x128xf32>
    %c0_45 = arith.constant 0 : index
    %c0_46 = arith.constant 0 : index
    %34 = vector.load %arg5[%c0_45, %c0_46] : memref<1x128xf32, #tpu.memory_space<vmem>>, vector<1x128xf32>
    %35 = vector.broadcast %34 : vector<1x128xf32> to vector<16x128xf32>
    %36 = arith.addf %33, %35 : vector<16x128xf32>
    %cst_47 = arith.constant 0.000000e+00 : f32
    %37 = vector.broadcast %cst_47 : f32 to vector<16x128xf32>
    %38 = arith.maximumf %36, %37 : vector<16x128xf32>
    %39 = vector.shape_cast %38 : vector<16x128xf32> to vector<1x16x128xf32>
    %c0_48 = arith.constant 0 : index
    %c0_49 = arith.constant 0 : index
    %c0_50 = arith.constant 0 : index
    %40 = vector.load %arg6[%c0_48, %c0_49, %c0_50] : memref<1x16x128xf32, #tpu.memory_space<vmem>>, vector<1x16x128xf32>
    tpu.vector_store %arg6[%c0_48, %c0_49, %c0_50], %39 {strides = array<i32>} : memref<1x16x128xf32, #tpu.memory_space<vmem>>, vector<1x16x128xf32>,
    return
  }
  func.func @transform_0(%arg0: i32) -> (i32, i32, i32) {
    %c0_i32 = arith.constant 0 : i32
    %c0_i32_0 = arith.constant 0 : i32
    %c0_i32_1 = arith.constant 0 : i32
    return %arg0, %c0_i32, %c0_i32_0 : i32, i32, i32
  }
  func.func @transform_1(%arg0: i32) -> (i32, i32) {
    %c0_i32 = arith.constant 0 : i32
    %c0_i32_0 = arith.constant 0 : i32
    %c0_i32_1 = arith.constant 0 : i32
    return %c0_i32, %c0_i32_0 : i32, i32
  }
  func.func @transform_2(%arg0: i32) -> (i32, i32) {
    %c0_i32 = arith.constant 0 : i32
    %c0_i32_0 = arith.constant 0 : i32
    %c0_i32_1 = arith.constant 0 : i32
    return %c0_i32, %c0_i32_0 : i32, i32
  }
  func.func @transform_3(%arg0: i32) -> (i32, i32) {
    %c0_i32 = arith.constant 0 : i32
    %c0_i32_0 = arith.constant 0 : i32
    %c0_i32_1 = arith.constant 0 : i32
    return %c0_i32, %c0_i32_0 : i32, i32
  }
  func.func @transform_4(%arg0: i32) -> (i32, i32) {
    %c0_i32 = arith.constant 0 : i32
    %c0_i32_0 = arith.constant 0 : i32
    %c0_i32_1 = arith.constant 0 : i32
    return %c0_i32, %c0_i32_0 : i32, i32
  }
  func.func @transform_5(%arg0: i32) -> (i32, i32, i32) {
    %c0_i32 = arith.constant 0 : i32
    %c0_i32_0 = arith.constant 0 : i32
    %c0_i32_1 = arith.constant 0 : i32
    return %arg0, %c0_i32, %c0_i32_0 : i32, i32, i32
  }
}

</mosaic_0001>

<llo_original>
// kernel: tile.13
$region0: #{tile.13}
  #allocation0 [shape = 's32[1]{0}', space=sflag, size = 0x4, scoped, tag = 'scoped memory for tile.13']
  %s0 = inlined_call_operand.vmem [shape: f32[8], index: 0, kind: input, shape index: {}]
  %s1 = inlined_call_operand.vmem [shape: f32[16,8], index: 1, kind: output, shape index: {}]
  // Predicated region
  $region2: #{tile.13} parent=0 // pred_check
    _
  $region3: #{tile.13} parent=0 // pred_check_branch
    %3 = sbr.rel (0) target = $region5
  $region4: #{tile.13} parent=0 // pred_region
    _
  $region5: #{tile.13} parent=0 // pred_fallthru
    _
  %v4 = vld [vmem:[%s0] ss:$0 sm:$0xff]
  %5 = vst [vmem:[%s1] sm:$0xff] %v4
  %s6 = scalar_lea.vmem %s1, 8
  %7 = vst [vmem:[%s6] sm:$0xff] %v4

// kernel: tile.14
$region0: #{tile.14}
  %s0 = inlined_call_operand.vmem [shape: f32[16,8], index: 0, kind: input, shape index: {}]
  %s1 = inlined_call_operand.vmem [shape: f32[1,128], index: 1, kind: output, shape index: {}]
  $region1: #{tile.14} parent=0
    #allocation0 [shape = 'u8[4096]{0}', space=vmem, size = 0x1000, scoped, tag = 'scoped mem for output reshape']
    %v2 = vld [vmem:[%s0] sm:$0x1]
    %vm3 = vcmask 64512
    %4 = vst.msk [vmem:[#allocation0] sm:$0x1] %vm3, %v2
    %s5 = scalar_lea.vmem %s0, 15
    %v6 = vld [vmem:[%s5] sm:$0x1]
    %7 = vrot.lane.b32.xlu0 %v6, 120
    %v8 = vpop.permute.xlu0 %7
    %vm9 = vcmask 1048512
    %10 = vst.msk [vmem:[#allocation0] sm:$0x1] %vm9, %v8
    %s11 = scalar_lea.vmem %s0, 14
    %v12 = vld [vmem:[%s11] sm:$0x1]
    %13 = vrot.lane.b32.xlu0 %v12, 112
    %v14 = vpop.permute.xlu0 %13
    %vm15 = vcmask 982912
    %16 = vst.msk [vmem:[#allocation0] sm:$0x1] %vm15, %v14
    %s17 = scalar_lea.vmem %s0, 13
    %v18 = vld [vmem:[%s17] sm:$0x1]
    %19 = vrot.lane.b32.xlu0 %v18, 104
    %v20 = vpop.permute.xlu0 %19
    %vm21 = vcmask 917312
    %22 = vst.msk [vmem:[#allocation0] sm:$0x1] %vm21, %v20
    %s23 = scalar_lea.vmem %s0, 12
    %v24 = vld [vmem:[%s23] sm:$0x1]
    %25 = vrot.lane.b32.xlu0 %v24, 96
    %v26 = vpop.permute.xlu0 %25
    %vm27 = vcmask 851712
    %28 = vst.msk [vmem:[#allocation0] sm:$0x1] %vm27, %v26
    %s29 = scalar_lea.vmem %s0, 11
    %v30 = vld [vmem:[%s29] sm:$0x1]
    %31 = vrot.lane.b32.xlu0 %v30, 88
    %v32 = vpop.permute.xlu0 %31
    %vm33 = vcmask 786112
    %34 = vst.msk [vmem:[#allocation0] sm:$0x1] %vm33, %v32
    %s35 = scalar_lea.vmem %s0, 10
    %v36 = vld [vmem:[%s35] sm:$0x1]
    %37 = vrot.lane.b32.xlu0 %v36, 80
    %v38 = vpop.permute.xlu0 %37
    %vm39 = vcmask 720512
    %40 = vst.msk [vmem:[#allocation0] sm:$0x1] %vm39, %v38
    %s41 = scalar_lea.vmem %s0, 9
    %v42 = vld [vmem:[%s41] sm:$0x1]
    %43 = vrot.lane.b32.xlu0 %v42, 72
    %v44 = vpop.permute.xlu0 %43
    %vm45 = vcmask 654912
    %46 = vst.msk [vmem:[#allocation0] sm:$0x1] %vm45, %v44
    %s47 = scalar_lea.vmem %s0, 8
    %v48 = vld [vmem:[%s47] sm:$0x1]
    %49 = vrot.lane.b32.xlu0 %v48, 64
    %v50 = vpop.permute.xlu0 %49
    %vm51 = vcmask 589312
    %52 = vst.msk [vmem:[#allocation0] sm:$0x1] %vm51, %v50
    %s53 = scalar_lea.vmem %s0, 7
    %v54 = vld [vmem:[%s53] sm:$0x1]
    %55 = vrot.lane.b32.xlu0 %v54, 56
    %v56 = vpop.permute.xlu0 %55
    %vm57 = vcmask 523712
    %58 = vst.msk [vmem:[#allocation0] sm:$0x1] %vm57, %v56
    %s59 = scalar_lea.vmem %s0, 6
    %v60 = vld [vmem:[%s59] sm:$0x1]
    %61 = vrot.lane.b32.xlu0 %v60, 48
    %v62 = vpop.permute.xlu0 %61
    %vm63 = vcmask 458112
    %64 = vst.msk [vmem:[#allocation0] sm:$0x1] %vm63, %v62
    %s65 = scalar_lea.vmem %s0, 5
    %v66 = vld [vmem:[%s65] sm:$0x1]
    %67 = vrot.lane.b32.xlu0 %v66, 40
    %v68 = vpop.permute.xlu0 %67
    %vm69 = vcmask 392512
    %70 = vst.msk [vmem:[#allocation0] sm:$0x1] %vm69, %v68
    %s71 = scalar_lea.vmem %s0, 4
    %v72 = vld [vmem:[%s71] sm:$0x1]
    %73 = vrot.lane.b32.xlu0 %v72, 32
    %v74 = vpop.permute.xlu0 %73
    %vm75 = vcmask 326912
    %76 = vst.msk [vmem:[#allocation0] sm:$0x1] %vm75, %v74
    %s77 = scalar_lea.vmem %s0, 3
    %v78 = vld [vmem:[%s77] sm:$0x1]
    %79 = vrot.lane.b32.xlu0 %v78, 24
    %v80 = vpop.permute.xlu0 %79
    %vm81 = vcmask 261312
    %82 = vst.msk [vmem:[#allocation0] sm:$0x1] %vm81, %v80
    %s83 = scalar_lea.vmem %s0, 2
    %v84 = vld [vmem:[%s83] sm:$0x1]
    %85 = vrot.lane.b32.xlu0 %v84, 16
    %v86 = vpop.permute.xlu0 %85
    %vm87 = vcmask 195712
    %88 = vst.msk [vmem:[#allocation0] sm:$0x1] %vm87, %v86
    %s89 = scalar_lea.vmem %s0, 1
    %v90 = vld [vmem:[%s89] sm:$0x1]
    %91 = vrot.lane.b32.xlu0 %v90, 8
    %v92 = vpop.permute.xlu0 %91
    %vm93 = vcmask 130112
    %94 = vst.msk [vmem:[#allocation0] sm:$0x1] %vm93, %v92
    %s96 = ssub.s32 2, 1
    %v97 = vld [vmem:[#allocation0] sm:%s96]
    %s99 = ssub.s32 2, 1
    %100 = vst [vmem:[%s1] sm:%s99] %v97

// kernel: double_conv.1
$region0: #{double_conv.1}
  #allocation0 [shape = 'u32[]', space=smem, size = 0x4, offset = 0x4, fixed_abs, tag = 'smem constant byte address 0x4 - core index']
  #allocation1 [shape = 'u32[72,128]{1,0:T(1,128)}', space=vmem, size = 0x9000, scoped, tag = 'internal scratch']
  #allocation2 [shape = 'bf16[1,16,192]{2,1,0:T(8,128)(2,1)}', space=vmem, size = 0x2000, scoped, tag = 'scratch operand']
  #allocation3 [shape = 'bf16[1,16,384]{2,1,0:T(8,128)(2,1)}', space=vmem, size = 0x3000, scoped, tag = 'scratch operand']
  %s0 = inlined_call_operand.vmem [shape: bf16[2,16,64], index: 0, kind: input, shape index: {}]
  %s1 = inlined_call_operand.vmem [shape: bf16[192,128], index: 1, kind: input, shape index: {}]
  %s2 = inlined_call_operand.vmem [shape: f32[1,128], index: 2, kind: input, shape index: {}]
  %s3 = inlined_call_operand.vmem [shape: bf16[384,128], index: 3, kind: input, shape index: {}]
  %s4 = inlined_call_operand.vmem [shape: f32[1,128], index: 4, kind: input, shape index: {}]
  %s5 = inlined_call_operand.vmem [shape: f32[2,16,128], index: 5, kind: output, shape index: {}]
  %s6 = sld [smem:[#allocation0]]
  $region53: #{double_conv.1} parent=0
    _
  %s8 = ssub.s32 1, %s6
  %s9 = scalar_select 0, %s8, %s6
  loop: start=0, step=1, limit=4
  $region2: #{double_conv.1} parent=0 // loop_pre_header
    _
  $region3: #{double_conv.1} parent=0 // loop_header
    %s11 = sphi 0, %s15
    %p12 = scmp.ge.s32.totalorder %s11, 4
    %s21 = sphi 0, %s23
    %s24 = sphi 0, %s21
    %s25 = sphi 0, %s24
    %s41 = sphi 0, %s25
    %s45 = sphi 0, %s45
    %s47 = sphi 0, %s45
    %s48 = sphi 0, %s47
    %s62 = sphi 0, %s48
    %s66 = sphi 0, %s66
    %s68 = sphi 0, %s66
    %s69 = sphi 0, %s68
    %s83 = sphi 0, %s69
    %s87 = sphi 0, %s87
    %s89 = sphi 0, %s87
    %s90 = sphi 0, %s89
    %s104 = sphi 0, %s90
    %s108 = sphi 0, %s108
    %s110 = sphi 0, %s108
    %s111 = sphi 0, %s110
    %s125 = sphi 0, %s111
    %s131 = sphi 0, %s133
    %s134 = sphi 0, %s131
    %s135 = sphi 0, %s134
    %s151 = sphi 0, %s135
  $region4: #{double_conv.1} parent=0 // loop_header_branch
    %14 = sbr.rel (%p12) target = $region8
  $region5: #{double_conv.1} parent=0 // loop_body
    %s16 = ssub.s32 %s11, 1
    %s17 = ssub.s32 %s11, 2
    %s18 = sadd.s32 %s11, 1
    %s19 = ssub.s32 %s11, %s18
    %p20 = scmp.eq.s32.totalorder %s19, 0
    %s22 = sadd.s32 %s21, 1
    %s23 = scalar_select %p20, %s21, %s22
    %p26 = pneg %p20
    %p27 = scmp.eq.s32.totalorder %s11, 1
    %p28 = por %p26, %p27
    %p29 = scmp.ne.s32.totalorder %s21, %s24
    %p30 = scmp.eq.s32.totalorder %s11, 0
    %p31 = por %p29, %p30
    %p32 = scmp.ne.s32.totalorder %s21, %s24
    %p33 = scmp.eq.s32.totalorder %s16, 1
    %p34 = por %p32, %p33
    %p35 = scmp.ne.s32.totalorder %s24, %s25
    %p36 = scmp.eq.s32.totalorder %s16, 0
    %p37 = por %p35, %p36
    %p38 = scmp.ne.s32.totalorder %s24, %s25
    %p39 = scmp.eq.s32.totalorder %s17, 1
    %p40 = por %p38, %p39
    %p42 = scmp.ne.s32.totalorder %s25, %s41
    %p43 = scmp.eq.s32.totalorder %s17, 0
    %p44 = por %p42, %p43
    %s46 = sadd.s32 %s45, 1
    %p49 = scmp.eq.s32.totalorder %s11, 1
    %p50 = scmp.ne.s32.totalorder %s45, %s47
    %p51 = scmp.eq.s32.totalorder %s11, 0
    %p52 = por %p50, %p51
    %p53 = scmp.ne.s32.totalorder %s45, %s47
    %p54 = scmp.eq.s32.totalorder %s16, 1
    %p55 = por %p53, %p54
    %p56 = scmp.ne.s32.totalorder %s47, %s48
    %p57 = scmp.eq.s32.totalorder %s16, 0
    %p58 = por %p56, %p57
    %p59 = scmp.ne.s32.totalorder %s47, %s48
    %p60 = scmp.eq.s32.totalorder %s17, 1
    %p61 = por %p59, %p60
    %p63 = scmp.ne.s32.totalorder %s48, %s62
    %p64 = scmp.eq.s32.totalorder %s17, 0
    %p65 = por %p63, %p64
    %s67 = sadd.s32 %s66, 1
    %p70 = scmp.eq.s32.totalorder %s11, 1
    %p71 = scmp.ne.s32.totalorder %s66, %s68
    %p72 = scmp.eq.s32.totalorder %s11, 0
    %p73 = por %p71, %p72
    %p74 = scmp.ne.s32.totalorder %s66, %s68
    %p75 = scmp.eq.s32.totalorder %s16, 1
    %p76 = por %p74, %p75
    %p77 = scmp.ne.s32.totalorder %s68, %s69
    %p78 = scmp.eq.s32.totalorder %s16, 0
    %p79 = por %p77, %p78
    %p80 = scmp.ne.s32.totalorder %s68, %s69
    %p81 = scmp.eq.s32.totalorder %s17, 1
    %p82 = por %p80, %p81
    %p84 = scmp.ne.s32.totalorder %s69, %s83
    %p85 = scmp.eq.s32.totalorder %s17, 0
    %p86 = por %p84, %p85
    %s88 = sadd.s32 %s87, 1
    %p91 = scmp.eq.s32.totalorder %s11, 1
    %p92 = scmp.ne.s32.totalorder %s87, %s89
    %p93 = scmp.eq.s32.totalorder %s11, 0
    %p94 = por %p92, %p93
    %p95 = scmp.ne.s32.totalorder %s87, %s89
    %p96 = scmp.eq.s32.totalorder %s16, 1
    %p97 = por %p95, %p96
    %p98 = scmp.ne.s32.totalorder %s89, %s90
    %p99 = scmp.eq.s32.totalorder %s16, 0
    %p100 = por %p98, %p99
    %p101 = scmp.ne.s32.totalorder %s89, %s90
    %p102 = scmp.eq.s32.totalorder %s17, 1
    %p103 = por %p101, %p102
    %p105 = scmp.ne.s32.totalorder %s90, %s104
    %p106 = scmp.eq.s32.totalorder %s17, 0
    %p107 = por %p105, %p106
    %s109 = sadd.s32 %s108, 1
    %p112 = scmp.eq.s32.totalorder %s11, 1
    %p113 = scmp.ne.s32.totalorder %s108, %s110
    %p114 = scmp.eq.s32.totalorder %s11, 0
    %p115 = por %p113, %p114
    %p116 = scmp.ne.s32.totalorder %s108, %s110
    %p117 = scmp.eq.s32.totalorder %s16, 1
    %p118 = por %p116, %p117
    %p119 = scmp.ne.s32.totalorder %s110, %s111
    %p120 = scmp.eq.s32.totalorder %s16, 0
    %p121 = por %p119, %p120
    %p122 = scmp.ne.s32.totalorder %s110, %s111
    %p123 = scmp.eq.s32.totalorder %s17, 1
    %p124 = por %p122, %p123
    %p126 = scmp.ne.s32.totalorder %s111, %s125
    %p127 = scmp.eq.s32.totalorder %s17, 0
    %p128 = por %p126, %p127
    %s129 = ssub.s32 %s11, %s18
    %p130 = scmp.eq.s32.totalorder %s129, 0
    %s132 = sadd.s32 %s131, 1
    %s133 = scalar_select %p130, %s131, %s132
    %p136 = pneg %p130
    %p137 = scmp.eq.s32.totalorder %s11, 1
    %p138 = por %p136, %p137
    %p139 = scmp.ne.s32.totalorder %s131, %s134
    %p140 = scmp.eq.s32.totalorder %s11, 0
    %p141 = por %p139, %p140
    %p142 = scmp.ne.s32.totalorder %s131, %s134
    %p143 = scmp.eq.s32.totalorder %s16, 1
    %p144 = por %p142, %p143
    %p145 = scmp.ne.s32.totalorder %s134, %s135
    %p146 = scmp.eq.s32.totalorder %s16, 0
    %p147 = por %p145, %p146
    %p148 = scmp.ne.s32.totalorder %s134, %s135
    %p149 = scmp.eq.s32.totalorder %s17, 1
    %p150 = por %p148, %p149
    %p152 = scmp.ne.s32.totalorder %s135, %s151
    %p153 = scmp.eq.s32.totalorder %s17, 0
    %p154 = por %p152, %p153
    %p155 = scmp.le.s32.totalorder 1, %s11
    %p156 = scmp.lt.s32.totalorder %s11, 3
    %p157 = pnand %p155, %p156
    %p158 = pneg %p157
    // Predicated region
    $region9: #{double_conv.1} parent=5 // pred_check
      _
    $region10: #{double_conv.1} parent=5 // pred_check_branch
      %160 = sbr.rel (%p157) target = $region12
    $region11: #{double_conv.1} parent=5 // pred_region
      %s161 = ssub.s32 %s11, 1
      // Predicated region
      $region13: #{double_conv.1} parent=11 // pred_check
        %p162 = pneg %p58
      $region14: #{double_conv.1} parent=11 // pred_check_branch
        %164 = sbr.rel (%p162) target = $region16
      $region15: #{double_conv.1} parent=11 // pred_region
        _
      $region16: #{double_conv.1} parent=11 // pred_fallthru
        _
      // Predicated region
      $region17: #{double_conv.1} parent=11 // pred_check
        %p165 = pneg %p79
      $region18: #{double_conv.1} parent=11 // pred_check_branch
        %167 = sbr.rel (%p165) target = $region20
      $region19: #{double_conv.1} parent=11 // pred_region
        _
      $region20: #{double_conv.1} parent=11 // pred_fallthru
        _
      // Predicated region
      $region21: #{double_conv.1} parent=11 // pred_check
        %p168 = pneg %p100
      $region22: #{double_conv.1} parent=11 // pred_check_branch
        %170 = sbr.rel (%p168) target = $region24
      $region23: #{double_conv.1} parent=11 // pred_region
        _
      $region24: #{double_conv.1} parent=11 // pred_fallthru
        _
      // Predicated region
      $region25: #{double_conv.1} parent=11 // pred_check
        %p171 = pneg %p121
      $region26: #{double_conv.1} parent=11 // pred_check_branch
        %173 = sbr.rel (%p171) target = $region28
      $region27: #{double_conv.1} parent=11 // pred_region
        _
      $region28: #{double_conv.1} parent=11 // pred_fallthru
        _
    $region12: #{double_conv.1} parent=5 // pred_fallthru
      _
    %p174 = scmp.lt.s32.totalorder %s11, 2
    // Predicated region
    $region29: #{double_conv.1} parent=5 // pred_check
      %p175 = pneg %p174
    $region30: #{double_conv.1} parent=5 // pred_check_branch
      %177 = sbr.rel (%p175) target = $region32
    $region31: #{double_conv.1} parent=5 // pred_region
      // Predicated region
      $region33: #{double_conv.1} parent=31 // pred_check
        %p178 = pneg %p31
      $region34: #{double_conv.1} parent=31 // pred_check_branch
        %180 = sbr.rel (%p178) target = $region36
      $region35: #{double_conv.1} parent=31 // pred_region
        %p181 = scmp.lt.s32.totalorder %s11, 1
        %s182 = scalar_select %p181, %s11, 1
        %s183 = smul.addr %s182, 2
        %s184 = smul.addr %s183, 4
        %s185 = scalar_lea.vmem %s0, %s184
      $region36: #{double_conv.1} parent=31 // pred_fallthru
        _
    $region32: #{double_conv.1} parent=5 // pred_fallthru
      _
    %p186 = scmp.le.s32.totalorder 1, %s11
    %p187 = scmp.lt.s32.totalorder %s11, 3
    %p188 = pnand %p186, %p187
    %p189 = pneg %p188
    // Predicated region
    $region37: #{double_conv.1} parent=5 // pred_check
      _
    $region38: #{double_conv.1} parent=5 // pred_check_branch
      %191 = sbr.rel (%p188) target = $region40
    $region39: #{double_conv.1} parent=5 // pred_region
      %s192 = ssub.s32 %s11, 1
      %p193 = scmp.lt.s32.totalorder %s16, 1
      %s194 = scalar_select %p193, %s16, 1
      %s195 = smul.addr %s194, 2
      %s196 = smul.addr %s195, 4
      %s197 = scalar_lea.vmem %s0, %s196
      %p198 = pneg %p37
      %p199 = pneg %p34
      %p200 = pneg %p58
      %p201 = pneg %p55
      %p202 = pneg %p79
      %p203 = pneg %p76
      %p204 = pneg %p100
      %p205 = pneg %p97
      %p206 = pneg %p121
      %p207 = pneg %p118
      %p208 = pneg %p147
      %p209 = pneg %p144
      %p210 = scmp.lt.s32.totalorder %s16, 1
      %s211 = scalar_select %p210, %s16, 1
      %s212 = smul.addr %s211, 2
      %s213 = smul.addr %s212, 8
      %s214 = scalar_lea.vmem %s5, %s213
      %p215 = scmp.lt.s32.totalorder %s16, 1
      %s216 = scalar_select %p215, %s16, 1
      %s217 = smul.addr %s216, 2
      %s218 = smul.addr %s217, 4
      %s219 = scalar_lea.vmem %s0, %s218
      %p220 = scmp.lt.s32.totalorder %s16, 1
      %s221 = scalar_select %p220, %s16, 1
      %s222 = smul.addr %s221, 2
      %s223 = smul.addr %s222, 8
      %s224 = scalar_lea.vmem %s5, %s223
      %v226 = vld [vmem:[%s219] sm:$0xf]
      %v227 = vld [vmem:[%s219 + $0x4] sm:$0xf]
      %vm228 = vcmask 516096
      %vm229 = vsmask.f32 256
      %vm230 = vmand %vm228, %vm229
      %v231 = vld [vmem:[#allocation2] sm:$0x1]
      %v232 = vsel %vm230, 0, %v231
      %233 = vst [vmem:[#allocation2] sm:$0x1] %v232
      %vm234 = vsmask.f32 4368
      %vm235 = vmor %vm229, %vm234
      %v237 = vshrl.u32 %v226, 16
      %v239 = vrot.slane %v237, 7
      %v240 = vshll.u32 %v226, 16
      %v242 = vor.u32 %v239, %v240
      %v243 = vrot.slane %v239, 4
      %v245 = vshrl.u32 %v227, 16
      %v247 = vrot.slane %v245, 7
      %v248 = vshll.u32 %v227, 16
      %v250 = vor.u32 %v247, %v248
      %v251 = vsel %vm235, %v243, %v250
      %vm254 = vcmask 519168
      %vm255 = vsmask.f32 7938
      %vm256 = vmand %vm254, %vm255
      %v257 = vld [vmem:[#allocation2] sm:$0xf]
      %v258 = vsel %vm256, %v242, %v257
      %259 = vst [vmem:[#allocation2] sm:$0xf] %v258
      %vm260 = vcmask 519168
      %261 = vst.msk [vmem:[#allocation2 + $0x8] sm:$0xf] %vm260, %v251
      %264 = vrot.lane.b32.xlu0 %v226, 64
      %v265 = vpop.permute.xlu0 %264
      %266 = vrot.lane.b32.xlu0 %v227, 64
      %v267 = vpop.permute.xlu0 %266
      %vm270 = vcmask 1043968
      %271 = vst.msk [vmem:[#allocation2] sm:$0xf] %vm270, %v265
      %272 = vst.msk [vmem:[#allocation2 + $0x8] sm:$0xf] %vm270, %v267
      %vm273 = vsmask.f32 3328
      %vm274 = vsmask.f32 7440
      %vm275 = vmor %vm273, %vm274
      %v276 = vrot.slane %v237, 4
      %v277 = vrot.slane %v240, 5
      %v278 = vor.u32 %v276, %v277
      %v279 = vrot.slane %v278, 4
      %v280 = vrot.slane %v248, 5
      %v281 = vsel %vm275, %v279, %v280
      %v282 = vrot.slane %v245, 4
      %v283 = vor.u32 %v282, %v280
      %v284 = vrot.slane %v283, 4
      %287 = vst.msk [vmem:[#allocation2 + $0x4] sm:$0xf] %vm260, %v281
      %vm288 = vmand %vm254, %vm273
      %v289 = vld [vmem:[#allocation2 + $0xc] sm:$0xf]
      %v290 = vsel %vm288, %v284, %v289
      %291 = vst [vmem:[#allocation2 + $0xc] sm:$0xf] %v290
      %vm292 = vcmask 519171
      %vm293 = vsmask.f32 7950
      %vm294 = vmand %vm292, %vm293
      %v295 = vld [vmem:[#allocation2 + $0xc] sm:$0x8]
      %v296 = vsel %vm294, 0, %v295
      %297 = vst [vmem:[#allocation2 + $0xc] sm:$0x8] %v296
      %v298 = vld [vmem:[#allocation2] sm:$0xff]
      %v299 = vld [vmem:[#allocation2 + $0x8] sm:$0xff]
      %v300 = vld [vmem:[%s1] sm:$0xf]
      %v301 = vld [vmem:[%s1 + $0x4] sm:$0xf]
      %v302 = vld [vmem:[%s1 + $0x8] sm:$0xf]
      %v303 = vld [vmem:[%s1 + $0xc] sm:$0xf]
      %v304 = vld [vmem:[%s1 + $0x10] sm:$0xf]
      %v305 = vld [vmem:[%s1 + $0x14] sm:$0xf]
      %v306 = vld [vmem:[%s1 + $0x18] sm:$0xf]
      %v307 = vld [vmem:[%s1 + $0x1c] sm:$0xf]
      %v308 = vld [vmem:[%s1 + $0x20] sm:$0xf]
      %v309 = vld [vmem:[%s1 + $0x24] sm:$0xf]
      %v310 = vld [vmem:[%s1 + $0x28] sm:$0xf]
      %v311 = vld [vmem:[%s1 + $0x2c] sm:$0xf]
      %v312 = vld [vmem:[%s1 + $0x30] sm:$0xf]
      %v313 = vld [vmem:[%s1 + $0x34] sm:$0xf]
      %v314 = vld [vmem:[%s1 + $0x38] sm:$0xf]
      %v315 = vld [vmem:[%s1 + $0x3c] sm:$0xf]
      %v316 = vld [vmem:[%s1 + $0x40] sm:$0xf]
      %v317 = vld [vmem:[%s1 + $0x44] sm:$0xf]
      %v318 = vld [vmem:[%s1 + $0x48] sm:$0xf]
      %v319 = vld [vmem:[%s1 + $0x4c] sm:$0xf]
      %v320 = vld [vmem:[%s1 + $0x50] sm:$0xf]
      %v321 = vld [vmem:[%s1 + $0x54] sm:$0xf]
      %v322 = vld [vmem:[%s1 + $0x58] sm:$0xf]
      %v323 = vld [vmem:[%s1 + $0x5c] sm:$0xf]
      %v324 = vld [vmem:[%s2] sm:$0x1]
      %v326 = vperm.slane %v324, 0
      %v330 = vunpack.c.l.b16 %v298
      %v331 = vunpack.c.h.b16 %v298
      %v332 = vunpack.c.l.b16 %v299
      %v333 = vunpack.c.h.b16 %v299
      %v334 = vpack.c.b16 %v332, %v330
      %v335 = vpack.c.b16 %v333, %v331
      %v361 = vunpack.c.l.b16 %v300
      %v362 = vunpack.c.l.b16 %v301
      %v363 = vunpack.c.l.b16 %v302
      %v364 = vunpack.c.l.b16 %v303
      %v365 = vunpack.c.l.b16 %v304
      %v366 = vunpack.c.l.b16 %v305
      %v367 = vunpack.c.l.b16 %v306
      %v368 = vunpack.c.l.b16 %v307
      %v369 = vunpack.c.l.b16 %v308
      %v370 = vunpack.c.l.b16 %v309
      %v371 = vunpack.c.l.b16 %v310
      %v372 = vunpack.c.l.b16 %v311
      %v373 = vunpack.c.l.b16 %v312
      %v374 = vunpack.c.l.b16 %v313
      %v375 = vunpack.c.l.b16 %v314
      %v376 = vunpack.c.l.b16 %v315
      %v377 = vunpack.c.l.b16 %v316
      %v378 = vunpack.c.l.b16 %v317
      %v379 = vunpack.c.l.b16 %v318
      %v380 = vunpack.c.l.b16 %v319
      %v381 = vunpack.c.l.b16 %v320
      %v382 = vunpack.c.l.b16 %v321
      %v383 = vunpack.c.l.b16 %v322
      %v384 = vunpack.c.l.b16 %v323
      %v385 = vpack.c.b16 %v362, %v361
      %v386 = vpack.c.b16 %v364, %v363
      %v387 = vpack.c.b16 %v366, %v365
      %v388 = vpack.c.b16 %v368, %v367
      %v389 = vpack.c.b16 %v370, %v369
      %v390 = vpack.c.b16 %v372, %v371
      %v391 = vpack.c.b16 %v374, %v373
      %v392 = vpack.c.b16 %v376, %v375
      %v393 = vpack.c.b16 %v378, %v377
      %v394 = vpack.c.b16 %v380, %v379
      %v395 = vpack.c.b16 %v382, %v381
      %v396 = vpack.c.b16 %v384, %v383
      %vm409 = vcmask 523264
      %v411 = vsel %vm409, %v335, 0
      %413 = vmatpush.bf16.msra.mxu0 %v392
      %414 = vmatpush.bf16.msra.mxu0 %v391
      %415 = vmatpush.bf16.msra.mxu0 %v390
      %416 = vmatpush.bf16.msra.mxu0 %v389
      %417 = vmatpush.bf16.msra.mxu0 %v388
      %418 = vmatpush.bf16.msra.mxu0 %v387
      %419 = vmatpush.bf16.msra.mxu0 %v386
      %420 = vmatpush.bf16.msra.mxu0 %v385
      %421 = vmatmul.bf16.gmra.mxu0 %v334
      %v422 = vpop.f32.mrf.mxu0
      %v423 = vadd.f32 %v326, %v422
      %v424 = vpop.f32.mrf.mxu0
      %v425 = vadd.f32 %v326, %v424
      %426 = vdwg.mxu0
      %427 = vmatpush.bf16.msra.mxu0 0
      %428 = vmatpush.bf16.msra.mxu0 0
      %429 = vmatpush.bf16.msra.mxu0 0
      %430 = vmatpush.bf16.msra.mxu0 0
      %431 = vmatpush.bf16.msra.mxu0 %v396
      %432 = vmatpush.bf16.msra.mxu0 %v395
      %433 = vmatpush.bf16.msra.mxu0 %v394
      %434 = vmatpush.bf16.msra.mxu0 %v393
      %435 = vmatmul.bf16.gmra.mxu0 %v411
      %v436 = vpop.f32.mrf.mxu0
      %v437 = vadd.f32 %v423, %v436
      %v438 = vpop.f32.mrf.mxu0
      %v439 = vadd.f32 %v425, %v438
      %440 = vdwg.mxu0
      %v441 = vmax.f32 %v437, 0.0
      %v442 = vmax.f32 %v439, 0.0
      %v443 = vpack.c.bf16 %v441, %v441
      %v444 = vpack.c.bf16 %v442, %v442
      %vm445 = vcmask 1040384
      %vm446 = vmand %vm445, %vm229
      %v447 = vld [vmem:[#allocation3] sm:$0x1]
      %v448 = vsel %vm446, 0, %v447
      %449 = vst [vmem:[#allocation3] sm:$0x1] %v448
      %v451 = vshrl.u32 %v443, 16
      %v453 = vrot.slane %v451, 7
      %v454 = vshll.u32 %v443, 16
      %v456 = vor.u32 %v453, %v454
      %v457 = vrot.slane %v453, 4
      %v459 = vshrl.u32 %v444, 16
      %v461 = vrot.slane %v459, 7
      %v462 = vshll.u32 %v444, 16
      %v464 = vor.u32 %v461, %v462
      %v465 = vsel %vm235, %v457, %v464
      %vm468 = vcmask 1043456
      %vm469 = vmand %vm468, %vm255
      %v470 = vld [vmem:[#allocation3] sm:$0xf]
      %v471 = vsel %vm469, %v456, %v470
      %472 = vst [vmem:[#allocation3] sm:$0xf] %v471
      %473 = vst [vmem:[#allocation3 + $0xc] sm:$0xf] %v465
      %474 = vst [vmem:[#allocation3 + $0x4] sm:$0xf] %v443
      %475 = vst [vmem:[#allocation3 + $0x10] sm:$0xf] %v444
      %v476 = vrot.slane %v451, 4
      %v477 = vrot.slane %v454, 5
      %v478 = vor.u32 %v476, %v477
      %v479 = vrot.slane %v478, 4
      %v480 = vrot.slane %v462, 5
      %v481 = vsel %vm275, %v479, %v480
      %v482 = vrot.slane %v459, 4
      %v483 = vor.u32 %v482, %v480
      %v484 = vrot.slane %v483, 4
      %487 = vst [vmem:[#allocation3 + $0x8] sm:$0xf] %v481
      %vm488 = vmand %vm468, %vm273
      %v489 = vld [vmem:[#allocation3 + $0x14] sm:$0xf]
      %v490 = vsel %vm488, %v484, %v489
      %491 = vst [vmem:[#allocation3 + $0x14] sm:$0xf] %v490
      %vm492 = vcmask 1043459
      %vm493 = vmand %vm492, %vm293
      %v494 = vld [vmem:[#allocation3 + $0x14] sm:$0x8]
      %v495 = vsel %vm493, 0, %v494
      %496 = vst [vmem:[#allocation3 + $0x14] sm:$0x8] %v495
      %v497 = vld [vmem:[#allocation3] sm:$0xff]
      %v498 = vld [vmem:[#allocation3 + $0x8] sm:$0xf]
      %v499 = vld [vmem:[#allocation3 + $0xc] sm:$0xff]
      %v500 = vld [vmem:[#allocation3 + $0x14] sm:$0xf]
      %v501 = vld [vmem:[%s3] sm:$0xf]
      %v502 = vld [vmem:[%s3 + $0x4] sm:$0xf]
      %v503 = vld [vmem:[%s3 + $0x8] sm:$0xf]
      %v504 = vld [vmem:[%s3 + $0xc] sm:$0xf]
      %v505 = vld [vmem:[%s3 + $0x10] sm:$0xf]
      %v506 = vld [vmem:[%s3 + $0x14] sm:$0xf]
      %v507 = vld [vmem:[%s3 + $0x18] sm:$0xf]
      %v508 = vld [vmem:[%s3 + $0x1c] sm:$0xf]
      %v509 = vld [vmem:[%s3 + $0x20] sm:$0xf]
      %v510 = vld [vmem:[%s3 + $0x24] sm:$0xf]
      %v511 = vld [vmem:[%s3 + $0x28] sm:$0xf]
      %v512 = vld [vmem:[%s3 + $0x2c] sm:$0xf]
      %v513 = vld [vmem:[%s3 + $0x30] sm:$0xf]
      %v514 = vld [vmem:[%s3 + $0x34] sm:$0xf]
      %v515 = vld [vmem:[%s3 + $0x38] sm:$0xf]
      %v516 = vld [vmem:[%s3 + $0x3c] sm:$0xf]
      %v517 = vld [vmem:[%s3 + $0x40] sm:$0xf]
      %v518 = vld [vmem:[%s3 + $0x44] sm:$0xf]
      %v519 = vld [vmem:[%s3 + $0x48] sm:$0xf]
      %v520 = vld [vmem:[%s3 + $0x4c] sm:$0xf]
      %v521 = vld [vmem:[%s3 + $0x50] sm:$0xf]
      %v522 = vld [vmem:[%s3 + $0x54] sm:$0xf]
      %v523 = vld [vmem:[%s3 + $0x58] sm:$0xf]
      %v524 = vld [vmem:[%s3 + $0x5c] sm:$0xf]
      %v525 = vld [vmem:[%s3 + $0x60] sm:$0xf]
      %v526 = vld [vmem:[%s3 + $0x64] sm:$0xf]
      %v527 = vld [vmem:[%s3 + $0x68] sm:$0xf]
      %v528 = vld [vmem:[%s3 + $0x6c] sm:$0xf]
      %v529 = vld [vmem:[%s3 + $0x70] sm:$0xf]
      %v530 = vld [vmem:[%s3 + $0x74] sm:$0xf]
      %v531 = vld [vmem:[%s3 + $0x78] sm:$0xf]
      %v532 = vld [vmem:[%s3 + $0x7c] sm:$0xf]
      %v533 = vld [vmem:[%s3 + $0x80] sm:$0xf]
      %v534 = vld [vmem:[%s3 + $0x84] sm:$0xf]
      %v535 = vld [vmem:[%s3 + $0x88] sm:$0xf]
      %v536 = vld [vmem:[%s3 + $0x8c] sm:$0xf]
      %v537 = vld [vmem:[%s3 + $0x90] sm:$0xf]
      %v538 = vld [vmem:[%s3 + $0x94] sm:$0xf]
      %v539 = vld [vmem:[%s3 + $0x98] sm:$0xf]
      %v540 = vld [vmem:[%s3 + $0x9c] sm:$0xf]
      %v541 = vld [vmem:[%s3 + $0xa0] sm:$0xf]
      %v542 = vld [vmem:[%s3 + $0xa4] sm:$0xf]
      %v543 = vld [vmem:[%s3 + $0xa8] sm:$0xf]
      %v544 = vld [vmem:[%s3 + $0xac] sm:$0xf]
      %v545 = vld [vmem:[%s3 + $0xb0] sm:$0xf]
      %v546 = vld [vmem:[%s3 + $0xb4] sm:$0xf]
      %v547 = vld [vmem:[%s3 + $0xb8] sm:$0xf]
      %v548 = vld [vmem:[%s3 + $0xbc] sm:$0xf]
      %v549 = vld [vmem:[%s4] sm:$0x1]
      %v551 = vperm.slane %v549, 0
      %v557 = vunpack.c.l.b16 %v497
      %v558 = vunpack.c.h.b16 %v497
      %v559 = vunpack.c.l.b16 %v498
      %v560 = vunpack.c.l.b16 %v499
      %v561 = vunpack.c.h.b16 %v499
      %v562 = vunpack.c.l.b16 %v500
      %v563 = vpack.c.b16 %v560, %v557
      %v564 = vpack.c.b16 %v561, %v558
      %v565 = vpack.c.b16 %v562, %v559
      %v617 = vunpack.c.l.b16 %v501
      %v618 = vunpack.c.l.b16 %v502
      %v619 = vunpack.c.l.b16 %v503
      %v620 = vunpack.c.l.b16 %v504
      %v621 = vunpack.c.l.b16 %v505
      %v622 = vunpack.c.l.b16 %v506
      %v623 = vunpack.c.l.b16 %v507
      %v624 = vunpack.c.l.b16 %v508
      %v625 = vunpack.c.l.b16 %v509
      %v626 = vunpack.c.l.b16 %v510
      %v627 = vunpack.c.l.b16 %v511
      %v628 = vunpack.c.l.b16 %v512
      %v629 = vunpack.c.l.b16 %v513
      %v630 = vunpack.c.l.b16 %v514
      %v631 = vunpack.c.l.b16 %v515
      %v632 = vunpack.c.l.b16 %v516
      %v633 = vunpack.c.l.b16 %v517
      %v634 = vunpack.c.l.b16 %v518
      %v635 = vunpack.c.l.b16 %v519
      %v636 = vunpack.c.l.b16 %v520
      %v637 = vunpack.c.l.b16 %v521
      %v638 = vunpack.c.l.b16 %v522
      %v639 = vunpack.c.l.b16 %v523
      %v640 = vunpack.c.l.b16 %v524
      %v641 = vunpack.c.l.b16 %v525
      %v642 = vunpack.c.l.b16 %v526
      %v643 = vunpack.c.l.b16 %v527
      %v644 = vunpack.c.l.b16 %v528
      %v645 = vunpack.c.l.b16 %v529
      %v646 = vunpack.c.l.b16 %v530
      %v647 = vunpack.c.l.b16 %v531
      %v648 = vunpack.c.l.b16 %v532
      %v649 = vunpack.c.l.b16 %v533
      %v650 = vunpack.c.l.b16 %v534
      %v651 = vunpack.c.l.b16 %v535
      %v652 = vunpack.c.l.b16 %v536
      %v653 = vunpack.c.l.b16 %v537
      %v654 = vunpack.c.l.b16 %v538
      %v655 = vunpack.c.l.b16 %v539
      %v656 = vunpack.c.l.b16 %v540
      %v657 = vunpack.c.l.b16 %v541
      %v658 = vunpack.c.l.b16 %v542
      %v659 = vunpack.c.l.b16 %v543
      %v660 = vunpack.c.l.b16 %v544
      %v661 = vunpack.c.l.b16 %v545
      %v662 = vunpack.c.l.b16 %v546
      %v663 = vunpack.c.l.b16 %v547
      %v664 = vunpack.c.l.b16 %v548
      %v665 = vpack.c.b16 %v618, %v617
      %v666 = vpack.c.b16 %v620, %v619
      %v667 = vpack.c.b16 %v622, %v621
      %v668 = vpack.c.b16 %v624, %v623
      %v669 = vpack.c.b16 %v626, %v625
      %v670 = vpack.c.b16 %v628, %v627
      %v671 = vpack.c.b16 %v630, %v629
      %v672 = vpack.c.b16 %v632, %v631
      %v673 = vpack.c.b16 %v634, %v633
      %v674 = vpack.c.b16 %v636, %v635
      %v675 = vpack.c.b16 %v638, %v637
      %v676 = vpack.c.b16 %v640, %v639
      %v677 = vpack.c.b16 %v642, %v641
      %v678 = vpack.c.b16 %v644, %v643
      %v679 = vpack.c.b16 %v646, %v645
      %v680 = vpack.c.b16 %v648, %v647
      %v681 = vpack.c.b16 %v650, %v649
      %v682 = vpack.c.b16 %v652, %v651
      %v683 = vpack.c.b16 %v654, %v653
      %v684 = vpack.c.b16 %v656, %v655
      %v685 = vpack.c.b16 %v658, %v657
      %v686 = vpack.c.b16 %v660, %v659
      %v687 = vpack.c.b16 %v662, %v661
      %v688 = vpack.c.b16 %v664, %v663
      %713 = vmatpush.bf16.msra.mxu0 %v672
      %714 = vmatpush.bf16.msra.mxu0 %v671
      %715 = vmatpush.bf16.msra.mxu0 %v670
      %716 = vmatpush.bf16.msra.mxu0 %v669
      %717 = vmatpush.bf16.msra.mxu0 %v668
      %718 = vmatpush.bf16.msra.mxu0 %v667
      %719 = vmatpush.bf16.msra.mxu0 %v666
      %720 = vmatpush.bf16.msra.mxu0 %v665
      %721 = vmatmul.bf16.gmra.mxu0 %v563
      %v722 = vpop.f32.mrf.mxu0
      %v723 = vadd.f32 %v551, %v722
      %v724 = vpop.f32.mrf.mxu0
      %v725 = vadd.f32 %v551, %v724
      %726 = vdwg.mxu0
      %727 = vmatpush.bf16.msra.mxu0 %v680
      %728 = vmatpush.bf16.msra.mxu0 %v679
      %729 = vmatpush.bf16.msra.mxu0 %v678
      %730 = vmatpush.bf16.msra.mxu0 %v677
      %731 = vmatpush.bf16.msra.mxu0 %v676
      %732 = vmatpush.bf16.msra.mxu0 %v675
      %733 = vmatpush.bf16.msra.mxu0 %v674
      %734 = vmatpush.bf16.msra.mxu0 %v673
      %735 = vmatmul.bf16.gmra.mxu0 %v564
      %v736 = vpop.f32.mrf.mxu0
      %v737 = vadd.f32 %v723, %v736
      %v738 = vpop.f32.mrf.mxu0
      %v739 = vadd.f32 %v725, %v738
      %740 = vdwg.mxu0
      %741 = vmatpush.bf16.msra.mxu0 %v688
      %742 = vmatpush.bf16.msra.mxu0 %v687
      %743 = vmatpush.bf16.msra.mxu0 %v686
      %744 = vmatpush.bf16.msra.mxu0 %v685
      %745 = vmatpush.bf16.msra.mxu0 %v684
      %746 = vmatpush.bf16.msra.mxu0 %v683
      %747 = vmatpush.bf16.msra.mxu0 %v682
      %748 = vmatpush.bf16.msra.mxu0 %v681
      %749 = vmatmul.bf16.gmra.mxu0 %v565
      %v750 = vpop.f32.mrf.mxu0
      %v751 = vadd.f32 %v737, %v750
      %v752 = vpop.f32.mrf.mxu0
      %v753 = vadd.f32 %v739, %v752
      %754 = vdwg.mxu0
      %v755 = vmax.f32 %v751, 0.0
      %v756 = vmax.f32 %v753, 0.0
      %757 = vst [vmem:[%s224] sm:$0xff] %v755
      %758 = vst [vmem:[%s224 + $0x8] sm:$0xff] %v756
      %p759 = scmp.lt.s32.totalorder %s16, 1
      %s760 = scalar_select %p759, %s16, 1
      %s761 = smul.addr %s760, 2
      %s762 = smul.addr %s761, 8
      %s763 = scalar_lea.vmem %s5, %s762
      // Predicated region
      $region41: #{double_conv.1} parent=39 // pred_check
        %p764 = pneg %p144
      $region42: #{double_conv.1} parent=39 // pred_check_branch
        %766 = sbr.rel (%p764) target = $region44
      $region43: #{double_conv.1} parent=39 // pred_region
        _
      $region44: #{double_conv.1} parent=39 // pred_fallthru
        _
    $region40: #{double_conv.1} parent=5 // pred_fallthru
      _
    %p767 = scmp.le.s32.totalorder 2, %s11
    // Predicated region
    $region45: #{double_conv.1} parent=5 // pred_check
      %p768 = pneg %p767
    $region46: #{double_conv.1} parent=5 // pred_check_branch
      %770 = sbr.rel (%p768) target = $region48
    $region47: #{double_conv.1} parent=5 // pred_region
      %s771 = ssub.s32 %s11, 2
      // Predicated region
      $region49: #{double_conv.1} parent=47 // pred_check
        %p772 = pneg %p150
      $region50: #{double_conv.1} parent=47 // pred_check_branch
        %774 = sbr.rel (%p772) target = $region52
      $region51: #{double_conv.1} parent=47 // pred_region
        %p775 = scmp.lt.s32.totalorder %s17, 1
        %s776 = scalar_select %p775, %s17, 1
        %s777 = smul.addr %s776, 2
        %s778 = smul.addr %s777, 8
        %s779 = scalar_lea.vmem %s5, %s778
      $region52: #{double_conv.1} parent=47 // pred_fallthru
        _
    $region48: #{double_conv.1} parent=5 // pred_fallthru
      _
  $region6: #{double_conv.1} parent=0 // loop_footer
    %s15 = sadd.s32 1, %s11
  $region7: #{double_conv.1} parent=0 // loop_footer_branch
    %10 = sbr.rel target = $region3
  $region8: #{double_conv.1} parent=0 // loop_exit
    _

</llo_original>
